<compile_context>
chip_gen: v5e
topology: v5e:2x2
jax: 0.10.0
libtpu: 0.0.40
codegen_flags: <defaults>
</compile_context>

<pallas_src>
import functools

import numpy as np

import jax
import jax.numpy as jnp
from jax.experimental import pallas as pl
from jax.experimental.pallas import tpu as pltpu

EPS = 1e-5


# --------------------------------------------------------------------------- #
# Pass 1: KxK conv of bn0(x) (bn0 folded into weights + border-bias map),
#         plus per-image mean-centered bn1 partial statistics.
# Layout per image: channels on sublanes, H*W flattened on lanes (lane-dense).
# --------------------------------------------------------------------------- #
def _conv1_stats_kernel(x_ref,     # (1, Cin, HW)  f32 raw input
                        w1_ref,    # (Cout, K*K*Cin) f32, bn0 scale folded in
                        bmap_ref,  # (Cout, HW) f32: bn0 shift * border masks
                        rc_ref,    # (2, HW) int32: row / col index per lane
                        z1_ref,    # (1, Cout, HW) f32 conv1 output (pre-bn1)
                        ps_ref,    # (1, Cout, 1)  per-image sum over HW
                        pm2_ref,   # (1, Cout, 1)  per-image centered sum-sq
                        xpad_ref,  # VMEM (Cin, 2*HW) f32
                        stk_ref,   # VMEM (K*K*Cin, HW) f32
                        *, Cin, H, W, K, P):
    HW = H * W
    x = x_ref[0]                                   # (Cin, HW)
    # Duplicate once along lanes so every conv tap is a contiguous window
    # (wrapped / out-of-image lanes are masked to zero below).
    xpad_ref[:, 0:HW] = x
    xpad_ref[:, HW:2 * HW] = x
    row = rc_ref[0:1, :]                           # (1, HW) int32
    col = rc_ref[1:2, :]
    for dy in range(K):
        for dx in range(K):
            oy, ox = dy - P, dx - P
            off = oy * W + ox
            start = off % HW
            win = x if off == 0 else xpad_ref[:, start:start + HW]  # (Cin, HW)
            conds = []
            if oy < 0:
                conds.append(row >= -oy)
            if oy > 0:
                conds.append(row < H - oy)
            if ox < 0:
                conds.append(col >= -ox)
            if ox > 0:
                conds.append(col < W - ox)
            if conds:
                valid = conds[0]
                for c in conds[1:]:
                    valid = valid & c
                win = jnp.where(valid, win, 0.0)   # 'same' zero pad in bn0 space
            tap = dy * K + dx
            stk_ref[tap * Cin:(tap + 1) * Cin, :] = win
    # Single fused MXU matmul over all K*K taps (contraction = K*K*Cin).
    acc = jnp.dot(w1_ref[...], stk_ref[...], preferred_element_type=jnp.float32)
    acc = acc + bmap_ref[...]
    # conv bias b1 dropped: exactly cancelled by bn1's batch-mean subtraction.
    z1_ref[0] = acc
    s = jnp.sum(acc, axis=1, keepdims=True)        # (Cout, 1)
    mu = s * (1.0 / HW)
    d = acc - mu
    ps_ref[0] = s
    pm2_ref[0] = jnp.sum(d * d, axis=1, keepdims=True)


# --------------------------------------------------------------------------- #
# Pass 2: bn1 (fused scale/shift) + ReLU -> y1 sums + y1 Gram partials.
# bn2 statistics are derived analytically from these in the wrapper, so the
# full z2 tensor never touches HBM.
# --------------------------------------------------------------------------- #
def _bn1_relu_gram_kernel(z1_ref,    # (Nblk, Cout, T) f32
                          s1_ref,    # (Cout, 1)
                          t1_ref,    # (Cout, 1)
                          ysum_ref,  # (1, Cout, 1)
                          gram_ref,  # (1, Cout, Cout)
                          ysum_acc, gram_acc, *, Nblk):
    @pl.when(pl.program_id(1) == 0)
    def _():
        ysum_acc[...] = jnp.zeros_like(ysum_acc)
        gram_acc[...] = jnp.zeros_like(gram_acc)
    s1 = s1_ref[...]
    t1 = t1_ref[...]
    for b in range(Nblk):
        y1 = jnp.maximum(z1_ref[b] * s1 + t1, 0.0)            # (Cout, T)
        ysum_acc[...] += jnp.sum(y1, axis=1, keepdims=True)
        gram_acc[...] += jax.lax.dot_general(
            y1, y1, (((1,), (1,)), ((), ())),
            preferred_element_type=jnp.float32)
    ysum_ref[0] = ysum_acc[...]
    gram_ref[0] = gram_acc[...]


# --------------------------------------------------------------------------- #
# Pass 3: bn1+ReLU -> 1x1 conv -> bn2 (fused scale/shift) + ReLU.
# --------------------------------------------------------------------------- #
def _final_kernel(z1_ref, w2_ref, s1_ref, t1_ref, s2_ref, t2_ref, o_ref, *, Nblk):
    w2 = w2_ref[...]
    s1 = s1_ref[...]
    t1 = t1_ref[...]
    s2 = s2_ref[...]
    t2 = t2_ref[...]
    for b in range(Nblk):
        y1 = jnp.maximum(z1_ref[b] * s1 + t1, 0.0)
        z2 = jnp.dot(w2, y1, preferred_element_type=jnp.float32)
        # conv bias b2 dropped: cancelled by bn2's batch-mean subtraction.
        o_ref[b] = jnp.maximum(z2 * s2 + t2, 0.0)


# --------------------------------------------------------------------------- #
# Wrapper helpers
# --------------------------------------------------------------------------- #
def _scale_shift(mean, var, gamma, beta):
    """Fold BN normalize+affine into a single per-channel scale/shift."""
    inv = jax.lax.rsqrt(var + EPS)
    scale = gamma * inv
    shift = beta - mean * scale
    return (scale.reshape(-1, 1).astype(jnp.float32),
            shift.reshape(-1, 1).astype(jnp.float32))


def _finalize_bn1(ps, pm2, N, HW, gamma, beta):
    """Combine per-image (sum, centered sum-sq) partials -> bn1 scale/shift."""
    s = ps[:, :, 0]                                   # (N, Cout)
    m2 = pm2[:, :, 0]                                 # (N, Cout)
    total = N * HW
    mean = jnp.sum(s, axis=0) / total
    m_img = s / HW
    var = (jnp.sum(m2, axis=0)
           + HW * jnp.sum((m_img - mean[None, :]) ** 2, axis=0)) / total
    return _scale_shift(mean, jnp.maximum(var, 0.0), gamma, beta)


def _finalize_bn2(ysum, gram, w2, total, gamma, beta):
    """bn2 stats derived analytically from y1 moments (z2 = w2 @ y1, no bias)."""
    m_y = jnp.sum(ysum[:, :, 0], axis=0) / total      # E[y1]
    G = jnp.sum(gram, axis=0) / total                 # E[y1 y1^T]
    mean = w2 @ m_y                                   # E[z2]
    ez2sq = jnp.einsum("oi,ij,oj->o", w2, G, w2)      # E[z2^2]
    var = jnp.maximum(ez2sq - mean * mean, 0.0)
    return _scale_shift(mean, var, gamma, beta)


def _row_col_and_masks(H, W, K, P):
    """(2,HW) int32 row/col lane map and (K*K,HW) 0/1 border masks (wrapper)."""
    hh, ww = np.meshgrid(np.arange(H), np.arange(W), indexing="ij")
    rowcol = np.stack([hh.reshape(-1), ww.reshape(-1)]).astype(np.int32)
    masks = np.zeros((K * K, H * W), np.float32)
    for dy in range(K):
        for dx in range(K):
            oy, ox = dy - P, dx - P
            valid = ((hh + oy >= 0) & (hh + oy < H)
                     & (ww + ox >= 0) & (ww + ox < W))
            masks[dy * K + dx] = valid.reshape(-1)
    return jnp.asarray(rowcol), jnp.asarray(masks)


def _pick_tile(HW, lane_cap):
    if HW <= lane_cap:
        return HW
    best = 0
    t = 128
    while t <= lane_cap:
        if HW % t == 0:
            best = t
        t += 128
    return best if best else HW


def _pick_blocks(N, HW, Cout, itemsize=4, lane_cap=16384, byte_cap=2 << 20):
    """Big lane-dense tiles (up to ~2 MiB), keeping >=2 grid steps if possible."""
    T = _pick_tile(HW, lane_cap)
    nT = HW // T
    nmax = N
    if nT == 1 and N > 1:
        nmax = max(1, N // 2)       # keep >=2 parallel grid steps (v7x megacore)
    Nblk = 1
    for d in range(1, nmax + 1):
        if N % d == 0 and d * Cout * T * itemsize <= byte_cap:
            Nblk = d
    return Nblk, T, N // Nblk, nT


def _compiler_params(dims, block_bytes):
    """Explicit VMEM budget: ~3x blocks + headroom, <=50% of physical VMEM."""
    try:
        phys = int(pltpu.get_tpu_info().vmem_capacity_bytes)
    except Exception:
        phys = 128 << 20
    ceiling = max(min(phys // 2, 48 << 20), 4 << 20)   # <=32 MiB on v7x
    limit = int(min(max(3 * block_bytes + (2 << 20), 4 << 20), ceiling))
    return pltpu.CompilerParams(dimension_semantics=dims, vmem_limit_bytes=limit)


# --------------------------------------------------------------------------- #
# Forward
# --------------------------------------------------------------------------- #
def upblock_forward(x_nchw, params):
    """params use PyTorch shapes: conv1 (Cout,Cin,K,K), conv2 (Cout,Cout,1,1)."""
    N, Cin, H, W = x_nchw.shape
    Cout, _, K, _ = params["w1"].shape
    P = (K - 1) // 2
    HW = H * W
    total = N * HW

    x = x_nchw.astype(jnp.float32)

    # bn0 statistics (training-mode batch stats): cheap XLA reduction; the whole
    # bn0 affine is then folded into conv1's weights + an additive border map.
    mean0 = jnp.mean(x, axis=(0, 2, 3))
    var0 = jnp.var(x, axis=(0, 2, 3))                    # biased, like BN train
    s0 = params["g0"].astype(jnp.float32) * jax.lax.rsqrt(var0 + EPS)   # (Cin,)
    t0 = params["be0"].astype(jnp.float32) - mean0 * s0                  # (Cin,)

    w1 = params["w1"].astype(jnp.float32)                # (Cout, Cin, K, K)
    w2 = params["w2"][:, :, 0, 0].astype(jnp.float32)    # (Cout, Cout) [out,in]

    # Stacked conv1 weights with bn0 scale folded in: column = tap*Cin + cin.
    w1_stk = jnp.transpose(w1 * s0[None, :, None, None],
                           (0, 2, 3, 1)).reshape(Cout, K * K * Cin)
    # bn0 shift contribution ('same' zero padding lives in bn0-output space):
    # bias_map[c, p] = sum_tap (w1[c, :, tap] @ t0) * mask[tap, p].
    rowcol, masks = _row_col_and_masks(H, W, K, P)
    wt0 = jnp.einsum("oikl,i->klo", w1, t0).reshape(K * K, Cout)
    bias_map = jnp.einsum("to,tp->op", wt0, masks)       # (Cout, HW)

    # Lane-dense layout: NCHW with H*W flattened on lanes (free reshape).
    x_flat = x.reshape(N, Cin, HW)

    # ------------------- pass 1: conv1 + bn1 partial stats -------------------
    p1_bytes = 4 * (Cin * HW + Cout * K * K * Cin + Cout * HW + 2 * HW
                    + Cout * HW + 2 * Cout
                    + 2 * Cin * HW + K * K * Cin * HW)
    z1, ps1, pm21 = pl.pallas_call(
        functools.partial(_conv1_stats_kernel, Cin=Cin, H=H, W=W, K=K, P=P),
        grid=(N,),
        in_specs=[
            pl.BlockSpec((1, Cin, HW), lambda n: (n, 0, 0)),
            pl.BlockSpec((Cout, K * K * Cin), lambda n: (0, 0)),
            pl.BlockSpec((Cout, HW), lambda n: (0, 0)),
            pl.BlockSpec((2, HW), lambda n: (0, 0)),
        ],
        out_specs=[
            pl.BlockSpec((1, Cout, HW), lambda n: (n, 0, 0)),
            pl.BlockSpec((1, Cout, 1), lambda n: (n, 0, 0)),
            pl.BlockSpec((1, Cout, 1), lambda n: (n, 0, 0)),
        ],
        out_shape=[
            jax.ShapeDtypeStruct((N, Cout, HW), jnp.float32),
            jax.ShapeDtypeStruct((N, Cout, 1), jnp.float32),
            jax.ShapeDtypeStruct((N, Cout, 1), jnp.float32),
        ],
        scratch_shapes=[
            pltpu.VMEM((Cin, 2 * HW), jnp.float32),
            pltpu.VMEM((K * K * Cin, HW), jnp.float32),
        ],
        compiler_params=_compiler_params(("parallel",), p1_bytes),
    )(x_flat, w1_stk, bias_map, rowcol)
    # TODO(synk): for very large H*W, pass 1 additionally needs spatial tiling
    # with a (K-1)-row halo (manual DMA or element-offset BlockSpecs).

    s1, t1 = _finalize_bn1(ps1, pm21, N, HW,
                           params["g1"].astype(jnp.float32),
                           params["be1"].astype(jnp.float32))

    # ----------- pass 2: bn1+relu -> y1 sums + y1 Gram (bn2 stats) -----------
    Nblk, T, Ng, nT = _pick_blocks(N, HW, Cout)
    p2_bytes = 4 * (Nblk * Cout * T + 2 * Cout + 2 * (Cout + Cout * Cout))
    ysum, gram = pl.pallas_call(
        functools.partial(_bn1_relu_gram_kernel, Nblk=Nblk),
        grid=(Ng, nT),
        in_specs=[
            pl.BlockSpec((Nblk, Cout, T), lambda g, t: (g, 0, t)),
            pl.BlockSpec((Cout, 1), lambda g, t: (0, 0)),
            pl.BlockSpec((Cout, 1), lambda g, t: (0, 0)),
        ],
        out_specs=[
            pl.BlockSpec((1, Cout, 1), lambda g, t: (g, 0, 0)),
            pl.BlockSpec((1, Cout, Cout), lambda g, t: (g, 0, 0)),
        ],
        out_shape=[
            jax.ShapeDtypeStruct((Ng, Cout, 1), jnp.float32),
            jax.ShapeDtypeStruct((Ng, Cout, Cout), jnp.float32),
        ],
        scratch_shapes=[
            pltpu.VMEM((Cout, 1), jnp.float32),
            pltpu.VMEM((Cout, Cout), jnp.float32),
        ],
        compiler_params=_compiler_params(("parallel", "arbitrary"), p2_bytes),
    )(z1, s1, t1)

    s2, t2 = _finalize_bn2(ysum, gram, w2, total,
                           params["g2"].astype(jnp.float32),
                           params["be2"].astype(jnp.float32))

    # --------- pass 3: bn1+relu -> 1x1 conv -> bn2+relu (no z2 in HBM) --------
    p3_bytes = 4 * (2 * Nblk * Cout * T + Cout * Cout + 4 * Cout)
    y = pl.pallas_call(
        functools.partial(_final_kernel, Nblk=Nblk),
        grid=(Ng, nT),
        in_specs=[
            pl.BlockSpec((Nblk, Cout, T), lambda g, t: (g, 0, t)),
            pl.BlockSpec((Cout, Cout), lambda g, t: (0, 0)),
            pl.BlockSpec((Cout, 1), lambda g, t: (0, 0)),
            pl.BlockSpec((Cout, 1), lambda g, t: (0, 0)),
            pl.BlockSpec((Cout, 1), lambda g, t: (0, 0)),
            pl.BlockSpec((Cout, 1), lambda g, t: (0, 0)),
        ],
        out_specs=pl.BlockSpec((Nblk, Cout, T), lambda g, t: (g, 0, t)),
        out_shape=jax.ShapeDtypeStruct((N, Cout, HW), jnp.float32),
        compiler_params=_compiler_params(("parallel", "parallel"), p3_bytes),
    )(z1, w2, s1, t1, s2, t2)

    return y.reshape(N, Cout, H, W)   # already NCHW — no transpose needed


# --------------------------------------------------------------------------- #
# Pure-JAX reference (mirrors the PyTorch forward, training-mode BN)
# --------------------------------------------------------------------------- #
def upblock_reference(x, params):
    def bn(t, g, b):
        m = jnp.mean(t, axis=(0, 2, 3), keepdims=True)
        v = jnp.mean((t - m) ** 2, axis=(0, 2, 3), keepdims=True)
        return (t - m) * jax.lax.rsqrt(v + EPS) * g.reshape(1, -1, 1, 1) \
            + b.reshape(1, -1, 1, 1)

    Cout, _, K, _ = params["w1"].shape
    P = (K - 1) // 2
    out = bn(x, params["g0"], params["be0"])
    out = jax.lax.conv_general_dilated(
        out, params["w1"], window_strides=(1, 1), padding=[(P, P), (P, P)],
        dimension_numbers=("NCHW", "OIHW", "NCHW")) + params["b1"].reshape(1, -1, 1, 1)
    out = jax.nn.relu(bn(out, params["g1"], params["be1"]))
    out = jax.lax.conv_general_dilated(
        out, params["w2"], window_strides=(1, 1), padding=[(0, 0), (0, 0)],
        dimension_numbers=("NCHW", "OIHW", "NCHW")) + params["b2"].reshape(1, -1, 1, 1)
    out = jax.nn.relu(bn(out, params["g2"], params["be2"]))
    return out


if __name__ == "__main__":
    N, Cin, Cout, H, W, K = 2, 4, 8, 16, 16, 3

    key = jax.random.PRNGKey(0)
    ks = jax.random.split(key, 11)
    params = {
        "w1": 0.1 * jax.random.normal(ks[0], (Cout, Cin, K, K), jnp.float32),
        "b1": 0.1 * jax.random.normal(ks[1], (Cout,), jnp.float32),
        "w2": 0.1 * jax.random.normal(ks[2], (Cout, Cout, 1, 1), jnp.float32),
        "b2": 0.1 * jax.random.normal(ks[3], (Cout,), jnp.float32),
        "g0": 1.0 + 0.1 * jax.random.normal(ks[4], (Cin,), jnp.float32),
        "be0": 0.1 * jax.random.normal(ks[5], (Cin,), jnp.float32),
        "g1": 1.0 + 0.1 * jax.random.normal(ks[6], (Cout,), jnp.float32),
        "be1": 0.1 * jax.random.normal(ks[7], (Cout,), jnp.float32),
        "g2": 1.0 + 0.1 * jax.random.normal(ks[8], (Cout,), jnp.float32),
        "be2": 0.1 * jax.random.normal(ks[9], (Cout,), jnp.float32),
    }
    x = jax.random.normal(ks[10], (N, Cin, H, W), jnp.float32)

    out = jax.block_until_ready(upblock_forward(x, params))
    ref = jax.block_until_ready(upblock_reference(x, params))

    assert out.shape == (N, Cout, H, W), out.shape
    err = float(jnp.max(jnp.abs(out - ref)))
    assert jnp.allclose(out, ref, atol=1e-3, rtol=1e-3), err
    print("KERNEL_OK")
</pallas_src>

<mosaic_0001>
module attributes {stable_mosaic.version = 11 : i64} {
  func.func @_conv1_stats_kernel(%arg0: i32, %arg1: memref<1x4x256xf32, #tpu.memory_space<vmem>>, %arg2: memref<8x36xf32, #tpu.memory_space<vmem>>, %arg3: memref<8x256xf32, #tpu.memory_space<vmem>>, %arg4: memref<2x256xi32, #tpu.memory_space<vmem>>, %arg5: memref<1x8x256xf32, #tpu.memory_space<vmem>>, %arg6: memref<1x8x1xf32, #tpu.memory_space<vmem>>, %arg7: memref<1x8x1xf32, #tpu.memory_space<vmem>>, %arg8: memref<4x512xf32, #tpu.memory_space<vmem>>, %arg9: memref<36x256xf32, #tpu.memory_space<vmem>>) attributes {dimension_semantics = [#tpu.dimension_semantics<parallel>], iteration_bounds = array<i64: 2>, scalar_prefetch = 0 : i64, scratch_operands = 2 : i64, tpu.core_type = #tpu.core_type<tc>, window_params = [{transform_indices = @transform_0, window_bounds = array<i64: 1, 4, 256>}, {pipeline_mode = #tpu.pipeline_mode<synchronous>, transform_indices = @transform_1, window_bounds = array<i64: 8, 36>}, {pipeline_mode = #tpu.pipeline_mode<synchronous>, transform_indices = @transform_2, window_bounds = array<i64: 8, 256>}, {pipeline_mode = #tpu.pipeline_mode<synchronous>, transform_indices = @transform_3, window_bounds = array<i64: 2, 256>}, {transform_indices = @transform_4, window_bounds = array<i64: 1, 8, 256>}, {transform_indices = @transform_5, window_bounds = array<i64: 1, 8, 1>}, {transform_indices = @transform_6, window_bounds = array<i64: 1, 8, 1>}]} {
    %c0 = arith.constant 0 : index
    %c0_0 = arith.constant 0 : index
    %c0_1 = arith.constant 0 : index
    %0 = vector.load %arg1[%c0, %c0_0, %c0_1] : memref<1x4x256xf32, #tpu.memory_space<vmem>>, vector<1x4x256xf32>
    %1 = vector.shape_cast %0 : vector<1x4x256xf32> to vector<4x256xf32>
    %c0_2 = arith.constant 0 : index
    %c0_3 = arith.constant 0 : index
    %2 = vector.load %arg8[%c0_2, %c0_3] : memref<4x512xf32, #tpu.memory_space<vmem>>, vector<4x256xf32>
    tpu.vector_store %arg8[%c0_2, %c0_3], %1 {strides = array<i32>} : memref<4x512xf32, #tpu.memory_space<vmem>>, vector<4x256xf32>,
    %c0_4 = arith.constant 0 : index
    %c256 = arith.constant 256 : index
    %3 = vector.load %arg8[%c0_4, %c256] : memref<4x512xf32, #tpu.memory_space<vmem>>, vector<4x256xf32>
    tpu.vector_store %arg8[%c0_4, %c256], %1 {strides = array<i32>} : memref<4x512xf32, #tpu.memory_space<vmem>>, vector<4x256xf32>,
    %c0_5 = arith.constant 0 : index
    %c0_6 = arith.constant 0 : index
    %4 = vector.load %arg4[%c0_5, %c0_6] : memref<2x256xi32, #tpu.memory_space<vmem>>, vector<1x256xi32>
    %c1 = arith.constant 1 : index
    %c0_7 = arith.constant 0 : index
    %5 = vector.load %arg4[%c1, %c0_7] : memref<2x256xi32, #tpu.memory_space<vmem>>, vector<1x256xi32>
    %c0_8 = arith.constant 0 : index
    %c239 = arith.constant 239 : index
    %6 = vector.load %arg8[%c0_8, %c239] : memref<4x512xf32, #tpu.memory_space<vmem>>, vector<4x256xf32>
    %c1_i32 = arith.constant 1 : i32
    %7 = vector.broadcast %c1_i32 : i32 to vector<1x256xi32>
    %8 = arith.cmpi sge, %4, %7 : vector<1x256xi32>
    %c1_i32_9 = arith.constant 1 : i32
    %9 = vector.broadcast %c1_i32_9 : i32 to vector<1x256xi32>
    %10 = arith.cmpi sge, %5, %9 : vector<1x256xi32>
    %11 = arith.andi %8, %10 : vector<1x256xi1>
    %cst = arith.constant 0.000000e+00 : f32
    %12 = vector.shape_cast %11 : vector<1x256xi1> to vector<1x256xi1>
    %13 = vector.broadcast %12 : vector<1x256xi1> to vector<4x256xi1>
    %14 = vector.broadcast %cst : f32 to vector<4x256xf32>
    %15 = arith.select %13, %6, %14 : vector<4x256xi1>, vector<4x256xf32>
    %c0_10 = arith.constant 0 : index
    %c0_11 = arith.constant 0 : index
    %16 = vector.load %arg9[%c0_10, %c0_11] : memref<36x256xf32, #tpu.memory_space<vmem>>, vector<4x256xf32>
    tpu.vector_store %arg9[%c0_10, %c0_11], %15 {strides = array<i32>} : memref<36x256xf32, #tpu.memory_space<vmem>>, vector<4x256xf32>,
    %c0_12 = arith.constant 0 : index
    %c240 = arith.constant 240 : index
    %17 = vector.load %arg8[%c0_12, %c240] : memref<4x512xf32, #tpu.memory_space<vmem>>, vector<4x256xf32>
    %c1_i32_13 = arith.constant 1 : i32
    %18 = vector.broadcast %c1_i32_13 : i32 to vector<1x256xi32>
    %19 = arith.cmpi sge, %4, %18 : vector<1x256xi32>
    %cst_14 = arith.constant 0.000000e+00 : f32
    %20 = vector.shape_cast %19 : vector<1x256xi1> to vector<1x256xi1>
    %21 = vector.broadcast %20 : vector<1x256xi1> to vector<4x256xi1>
    %22 = vector.broadcast %cst_14 : f32 to vector<4x256xf32>
    %23 = arith.select %21, %17, %22 : vector<4x256xi1>, vector<4x256xf32>
    %c4 = arith.constant 4 : index
    %c0_15 = arith.constant 0 : index
    %24 = vector.load %arg9[%c4, %c0_15] : memref<36x256xf32, #tpu.memory_space<vmem>>, vector<4x256xf32>
    tpu.vector_store %arg9[%c4, %c0_15], %23 {strides = array<i32>} : memref<36x256xf32, #tpu.memory_space<vmem>>, vector<4x256xf32>,
    %c0_16 = arith.constant 0 : index
    %c241 = arith.constant 241 : index
    %25 = vector.load %arg8[%c0_16, %c241] : memref<4x512xf32, #tpu.memory_space<vmem>>, vector<4x256xf32>
    %c1_i32_17 = arith.constant 1 : i32
    %26 = vector.broadcast %c1_i32_17 : i32 to vector<1x256xi32>
    %27 = arith.cmpi sge, %4, %26 : vector<1x256xi32>
    %c15_i32 = arith.constant 15 : i32
    %28 = vector.broadcast %c15_i32 : i32 to vector<1x256xi32>
    %29 = arith.cmpi slt, %5, %28 : vector<1x256xi32>
    %30 = arith.andi %27, %29 : vector<1x256xi1>
    %cst_18 = arith.constant 0.000000e+00 : f32
    %31 = vector.shape_cast %30 : vector<1x256xi1> to vector<1x256xi1>
    %32 = vector.broadcast %31 : vector<1x256xi1> to vector<4x256xi1>
    %33 = vector.broadcast %cst_18 : f32 to vector<4x256xf32>
    %34 = arith.select %32, %25, %33 : vector<4x256xi1>, vector<4x256xf32>
    %c8 = arith.constant 8 : index
    %c0_19 = arith.constant 0 : index
    %35 = vector.load %arg9[%c8, %c0_19] : memref<36x256xf32, #tpu.memory_space<vmem>>, vector<4x256xf32>
    tpu.vector_store %arg9[%c8, %c0_19], %34 {strides = array<i32>} : memref<36x256xf32, #tpu.memory_space<vmem>>, vector<4x256xf32>,
    %c0_20 = arith.constant 0 : index
    %c255 = arith.constant 255 : index
    %36 = vector.load %arg8[%c0_20, %c255] : memref<4x512xf32, #tpu.memory_space<vmem>>, vector<4x256xf32>
    %c1_i32_21 = arith.constant 1 : i32
    %37 = vector.broadcast %c1_i32_21 : i32 to vector<1x256xi32>
    %38 = arith.cmpi sge, %5, %37 : vector<1x256xi32>
    %cst_22 = arith.constant 0.000000e+00 : f32
    %39 = vector.shape_cast %38 : vector<1x256xi1> to vector<1x256xi1>
    %40 = vector.broadcast %39 : vector<1x256xi1> to vector<4x256xi1>
    %41 = vector.broadcast %cst_22 : f32 to vector<4x256xf32>
    %42 = arith.select %40, %36, %41 : vector<4x256xi1>, vector<4x256xf32>
    %c12 = arith.constant 12 : index
    %c0_23 = arith.constant 0 : index
    %43 = vector.load %arg9[%c12, %c0_23] : memref<36x256xf32, #tpu.memory_space<vmem>>, vector<4x256xf32>
    tpu.vector_store %arg9[%c12, %c0_23], %42 {strides = array<i32>} : memref<36x256xf32, #tpu.memory_space<vmem>>, vector<4x256xf32>,
    %c16 = arith.constant 16 : index
    %c0_24 = arith.constant 0 : index
    %44 = vector.load %arg9[%c16, %c0_24] : memref<36x256xf32, #tpu.memory_space<vmem>>, vector<4x256xf32>
    tpu.vector_store %arg9[%c16, %c0_24], %1 {strides = array<i32>} : memref<36x256xf32, #tpu.memory_space<vmem>>, vector<4x256xf32>,
    %c0_25 = arith.constant 0 : index
    %c1_26 = arith.constant 1 : index
    %45 = vector.load %arg8[%c0_25, %c1_26] : memref<4x512xf32, #tpu.memory_space<vmem>>, vector<4x256xf32>
    %c15_i32_27 = arith.constant 15 : i32
    %46 = vector.broadcast %c15_i32_27 : i32 to vector<1x256xi32>
    %47 = arith.cmpi slt, %5, %46 : vector<1x256xi32>
    %cst_28 = arith.constant 0.000000e+00 : f32
    %48 = vector.shape_cast %47 : vector<1x256xi1> to vector<1x256xi1>
    %49 = vector.broadcast %48 : vector<1x256xi1> to vector<4x256xi1>
    %50 = vector.broadcast %cst_28 : f32 to vector<4x256xf32>
    %51 = arith.select %49, %45, %50 : vector<4x256xi1>, vector<4x256xf32>
    %c20 = arith.constant 20 : index
    %c0_29 = arith.constant 0 : index
    %52 = vector.load %arg9[%c20, %c0_29] : memref<36x256xf32, #tpu.memory_space<vmem>>, vector<4x256xf32>
    tpu.vector_store %arg9[%c20, %c0_29], %51 {strides = array<i32>} : memref<36x256xf32, #tpu.memory_space<vmem>>, vector<4x256xf32>,
    %c0_30 = arith.constant 0 : index
    %c15 = arith.constant 15 : index
    %53 = vector.load %arg8[%c0_30, %c15] : memref<4x512xf32, #tpu.memory_space<vmem>>, vector<4x256xf32>
    %c15_i32_31 = arith.constant 15 : i32
    %54 = vector.broadcast %c15_i32_31 : i32 to vector<1x256xi32>
    %55 = arith.cmpi slt, %4, %54 : vector<1x256xi32>
    %c1_i32_32 = arith.constant 1 : i32
    %56 = vector.broadcast %c1_i32_32 : i32 to vector<1x256xi32>
    %57 = arith.cmpi sge, %5, %56 : vector<1x256xi32>
    %58 = arith.andi %55, %57 : vector<1x256xi1>
    %cst_33 = arith.constant 0.000000e+00 : f32
    %59 = vector.shape_cast %58 : vector<1x256xi1> to vector<1x256xi1>
    %60 = vector.broadcast %59 : vector<1x256xi1> to vector<4x256xi1>
    %61 = vector.broadcast %cst_33 : f32 to vector<4x256xf32>
    %62 = arith.select %60, %53, %61 : vector<4x256xi1>, vector<4x256xf32>
    %c24 = arith.constant 24 : index
    %c0_34 = arith.constant 0 : index
    %63 = vector.load %arg9[%c24, %c0_34] : memref<36x256xf32, #tpu.memory_space<vmem>>, vector<4x256xf32>
    tpu.vector_store %arg9[%c24, %c0_34], %62 {strides = array<i32>} : memref<36x256xf32, #tpu.memory_space<vmem>>, vector<4x256xf32>,
    %c0_35 = arith.constant 0 : index
    %c16_36 = arith.constant 16 : index
    %64 = vector.load %arg8[%c0_35, %c16_36] : memref<4x512xf32, #tpu.memory_space<vmem>>, vector<4x256xf32>
    %c15_i32_37 = arith.constant 15 : i32
    %65 = vector.broadcast %c15_i32_37 : i32 to vector<1x256xi32>
    %66 = arith.cmpi slt, %4, %65 : vector<1x256xi32>
    %cst_38 = arith.constant 0.000000e+00 : f32
    %67 = vector.shape_cast %66 : vector<1x256xi1> to vector<1x256xi1>
    %68 = vector.broadcast %67 : vector<1x256xi1> to vector<4x256xi1>
    %69 = vector.broadcast %cst_38 : f32 to vector<4x256xf32>
    %70 = arith.select %68, %64, %69 : vector<4x256xi1>, vector<4x256xf32>
    %c28 = arith.constant 28 : index
    %c0_39 = arith.constant 0 : index
    %71 = vector.load %arg9[%c28, %c0_39] : memref<36x256xf32, #tpu.memory_space<vmem>>, vector<4x256xf32>
    tpu.vector_store %arg9[%c28, %c0_39], %70 {strides = array<i32>} : memref<36x256xf32, #tpu.memory_space<vmem>>, vector<4x256xf32>,
    %c0_40 = arith.constant 0 : index
    %c17 = arith.constant 17 : index
    %72 = vector.load %arg8[%c0_40, %c17] : memref<4x512xf32, #tpu.memory_space<vmem>>, vector<4x256xf32>
    %c15_i32_41 = arith.constant 15 : i32
    %73 = vector.broadcast %c15_i32_41 : i32 to vector<1x256xi32>
    %74 = arith.cmpi slt, %4, %73 : vector<1x256xi32>
    %c15_i32_42 = arith.constant 15 : i32
    %75 = vector.broadcast %c15_i32_42 : i32 to vector<1x256xi32>
    %76 = arith.cmpi slt, %5, %75 : vector<1x256xi32>
    %77 = arith.andi %74, %76 : vector<1x256xi1>
    %cst_43 = arith.constant 0.000000e+00 : f32
    %78 = vector.shape_cast %77 : vector<1x256xi1> to vector<1x256xi1>
    %79 = vector.broadcast %78 : vector<1x256xi1> to vector<4x256xi1>
    %80 = vector.broadcast %cst_43 : f32 to vector<4x256xf32>
    %81 = arith.select %79, %72, %80 : vector<4x256xi1>, vector<4x256xf32>
    %c32 = arith.constant 32 : index
    %c0_44 = arith.constant 0 : index
    %82 = vector.load %arg9[%c32, %c0_44] : memref<36x256xf32, #tpu.memory_space<vmem>>, vector<4x256xf32>
    tpu.vector_store %arg9[%c32, %c0_44], %81 {strides = array<i32>} : memref<36x256xf32, #tpu.memory_space<vmem>>, vector<4x256xf32>,
    %c0_45 = arith.constant 0 : index
    %c0_46 = arith.constant 0 : index
    %83 = vector.load %arg2[%c0_45, %c0_46] : memref<8x36xf32, #tpu.memory_space<vmem>>, vector<8x36xf32>
    %c0_47 = arith.constant 0 : index
    %c0_48 = arith.constant 0 : index
    %84 = vector.load %arg9[%c0_47, %c0_48] : memref<36x256xf32, #tpu.memory_space<vmem>>, vector<36x256xf32>
    %cst_49 = arith.constant dense<0.000000e+00> : vector<8x256xf32>
    %85 = tpu.matmul %83, %84, %cst_49 {dimension_numbers = #tpu.dot_dimension_numbers<[1], [0], [0], [1], [0, 0, 1, 1], [], []>} : vector<8x36xf32>, vector<36x256xf32>, vector<8x256xf32> -> vector<8x256xf32>
    %c0_50 = arith.constant 0 : index
    %c0_51 = arith.constant 0 : index
    %86 = vector.load %arg3[%c0_50, %c0_51] : memref<8x256xf32, #tpu.memory_space<vmem>>, vector<8x256xf32>
    %87 = arith.addf %85, %86 : vector<8x256xf32>
    %c0_52 = arith.constant 0 : index
    %c0_53 = arith.constant 0 : index
    %c0_54 = arith.constant 0 : index
    %88 = vector.load %arg5[%c0_52, %c0_53, %c0_54] : memref<1x8x256xf32, #tpu.memory_space<vmem>>, vector<1x8x256xf32>
    %89 = vector.shape_cast %88 : vector<1x8x256xf32> to vector<8x256xf32>
    %90 = vector.shape_cast %87 : vector<8x256xf32> to vector<1x8x256xf32>
    tpu.vector_store %arg5[%c0_52, %c0_53, %c0_54], %90 {strides = array<i32>} : memref<1x8x256xf32, #tpu.memory_space<vmem>>, vector<1x8x256xf32>,
    %cst_55 = arith.constant dense<0.000000e+00> : vector<8xf32>
    %91 = vector.multi_reduction <add>, %87, %cst_55 [1] : vector<8x256xf32> to vector<8xf32>
    %92 = vector.shape_cast %91 : vector<8xf32> to vector<8x1xf32>
    %cst_56 = arith.constant 3.906250e-03 : f32
    %93 = vector.broadcast %cst_56 : f32 to vector<8x1xf32>
    %94 = arith.mulf %92, %93 : vector<8x1xf32>
    %95 = vector.broadcast %94 : vector<8x1xf32> to vector<8x256xf32>
    %96 = arith.subf %87, %95 : vector<8x256xf32>
    %c0_57 = arith.constant 0 : index
    %c0_58 = arith.constant 0 : index
    %c0_59 = arith.constant 0 : index
    %97 = vector.load %arg6[%c0_57, %c0_58, %c0_59] : memref<1x8x1xf32, #tpu.memory_space<vmem>>, vector<1x8x1xf32>
    %98 = vector.shape_cast %97 : vector<1x8x1xf32> to vector<8x1xf32>
    %99 = vector.shape_cast %92 : vector<8x1xf32> to vector<1x8x1xf32>
    tpu.vector_store %arg6[%c0_57, %c0_58, %c0_59], %99 {strides = array<i32>} : memref<1x8x1xf32, #tpu.memory_space<vmem>>, vector<1x8x1xf32>,
    %100 = arith.mulf %96, %96 : vector<8x256xf32>
    %cst_60 = arith.constant dense<0.000000e+00> : vector<8xf32>
    %101 = vector.multi_reduction <add>, %100, %cst_60 [1] : vector<8x256xf32> to vector<8xf32>
    %102 = vector.shape_cast %101 : vector<8xf32> to vector<8x1xf32>
    %c0_61 = arith.constant 0 : index
    %c0_62 = arith.constant 0 : index
    %c0_63 = arith.constant 0 : index
    %103 = vector.load %arg7[%c0_61, %c0_62, %c0_63] : memref<1x8x1xf32, #tpu.memory_space<vmem>>, vector<1x8x1xf32>
    %104 = vector.shape_cast %103 : vector<1x8x1xf32> to vector<8x1xf32>
    %105 = vector.shape_cast %102 : vector<8x1xf32> to vector<1x8x1xf32>
    tpu.vector_store %arg7[%c0_61, %c0_62, %c0_63], %105 {strides = array<i32>} : memref<1x8x1xf32, #tpu.memory_space<vmem>>, vector<1x8x1xf32>,
    return
  }
  func.func @transform_0(%arg0: i32) -> (i32, i32, i32) {
    %c0_i32 = arith.constant 0 : i32
    %c0_i32_0 = arith.constant 0 : i32
    %c0_i32_1 = arith.constant 0 : i32
    return %arg0, %c0_i32, %c0_i32_0 : i32, i32, i32
  }
  func.func @transform_1(%arg0: i32) -> (i32, i32) {
    %c0_i32 = arith.constant 0 : i32
    %c0_i32_0 = arith.constant 0 : i32
    %c0_i32_1 = arith.constant 0 : i32
    return %c0_i32, %c0_i32_0 : i32, i32
  }
  func.func @transform_2(%arg0: i32) -> (i32, i32) {
    %c0_i32 = arith.constant 0 : i32
    %c0_i32_0 = arith.constant 0 : i32
    %c0_i32_1 = arith.constant 0 : i32
    return %c0_i32, %c0_i32_0 : i32, i32
  }
  func.func @transform_3(%arg0: i32) -> (i32, i32) {
    %c0_i32 = arith.constant 0 : i32
    %c0_i32_0 = arith.constant 0 : i32
    %c0_i32_1 = arith.constant 0 : i32
    return %c0_i32, %c0_i32_0 : i32, i32
  }
  func.func @transform_4(%arg0: i32) -> (i32, i32, i32) {
    %c0_i32 = arith.constant 0 : i32
    %c0_i32_0 = arith.constant 0 : i32
    %c0_i32_1 = arith.constant 0 : i32
    return %arg0, %c0_i32, %c0_i32_0 : i32, i32, i32
  }
  func.func @transform_5(%arg0: i32) -> (i32, i32, i32) {
    %c0_i32 = arith.constant 0 : i32
    %c0_i32_0 = arith.constant 0 : i32
    %c0_i32_1 = arith.constant 0 : i32
    return %arg0, %c0_i32, %c0_i32_0 : i32, i32, i32
  }
  func.func @transform_6(%arg0: i32) -> (i32, i32, i32) {
    %c0_i32 = arith.constant 0 : i32
    %c0_i32_0 = arith.constant 0 : i32
    %c0_i32_1 = arith.constant 0 : i32
    return %arg0, %c0_i32, %c0_i32_0 : i32, i32, i32
  }
}

</mosaic_0001>

<llo_original>
// kernel: tpu_custom_call.1
$region0: #{tpu_custom_call.1}
  #allocation0 [shape = 'u32[]', space=smem, size = 0x4, offset = 0x4, fixed_abs, tag = 'smem constant byte address 0x4 - core index']
  #allocation1 [shape = 'u32[72,128]{1,0:T(1,128)}', space=vmem, size = 0x9000, scoped, tag = 'internal scratch']
  #allocation2 [shape = 'f32[4,512]{1,0:T(4,128)}', space=vmem, size = 0x2000, scoped, tag = 'scratch operand']
  #allocation3 [shape = 'f32[36,256]{1,0:T(8,128)}', space=vmem, size = 0xa000, scoped, tag = 'scratch operand']
  %s0 = inlined_call_operand.hbm [shape: f32[2,4,256], index: 0, kind: input, shape index: {}]
  %s1 = inlined_call_operand.hbm [shape: f32[8,36], index: 1, kind: input, shape index: {}]
  %s2 = inlined_call_operand.hbm [shape: f32[8,256], index: 2, kind: input, shape index: {}]
  %s3 = inlined_call_operand.hbm [shape: s32[2,256], index: 3, kind: input, shape index: {}]
  %s4 = inlined_call_operand.hbm [shape: f32[2,8,256], index: 4, kind: output, shape index: {0}]
  %s5 = inlined_call_operand.vmem [shape: f32[2,8,1], index: 5, kind: output, shape index: {1}]
  %s6 = inlined_call_operand.vmem [shape: f32[2,8,1], index: 6, kind: output, shape index: {2}]
  %7 = xla_tuple %s4, %s5, %s6
  %s8 = sld [smem:[#allocation0]]
  $region81: #{tpu_custom_call.1} parent=0
    _
  %s10 = ssub.s32 1, %s8
  %s11 = scalar_select 0, %s10, %s8
  $region1: #{tpu_custom_call.1} parent=0
    #allocation4 [shape = 'u8[8192]{0}', space=vmem, size = 0x2000, scoped, tag = 'input window, operand 0']
    #allocation5 [shape = 's32[2]{0}', space=sflag, size = 0x8, scoped, tag = 'scoped memory for tpu_custom_call.1']
    #allocation6 [shape = 's32[2]{0}', space=sflag, size = 0x8, scoped, tag = 'scoped memory for tpu_custom_call.1']
    #allocation7 [shape = 'u8[4096]{0}', space=vmem, size = 0x1000, scoped, tag = 'input window, operand 1, single buffered']
    #allocation8 [shape = 's32[1]{0}', space=sflag, size = 0x4, scoped, tag = 'scoped memory for tpu_custom_call.1']
    #allocation9 [shape = 'u8[8192]{0}', space=vmem, size = 0x2000, scoped, tag = 'input window, operand 2, single buffered']
    #allocation10 [shape = 'u8[2048]{0}', space=vmem, size = 0x800, scoped, tag = 'input window, operand 3, single buffered']
    #allocation11 [shape = 's32[1]{0}', space=sflag, size = 0x4, scoped, tag = 'scoped memory for tpu_custom_call.1']
    #allocation12 [shape = 'u8[16384]{0}', space=vmem, size = 0x4000, scoped, tag = 'output window, operand 0']
    %12 = vsyncpa [#allocation5], 0
    %s13 = scalar_lea.sflag [#allocation5], 1
    %14 = vsyncpa %s13, 0
    %15 = vsyncpa [#allocation8], 0
    %16 = vsyncpa [#allocation11], 0
    %17 = vsyncpa [#allocation6], 0
    %s18 = scalar_lea.sflag [#allocation6], 1
    %19 = vsyncpa %s18, 0
    loop: start=0, step=1, limit=4
    $region2: #{tpu_custom_call.1} parent=1 // loop_pre_header
      _
    $region3: #{tpu_custom_call.1} parent=1 // loop_header
      %s21 = sphi 0, %s25
      %p22 = scmp.ge.s32.totalorder %s21, 4
      %s31 = sphi 0, %s33
      %s34 = sphi 0, %s31
      %s35 = sphi 0, %s34
      %s51 = sphi 0, %s35
      %s55 = sphi 0, %s55
      %s57 = sphi 0, %s55
      %s58 = sphi 0, %s57
      %s72 = sphi 0, %s58
      %s76 = sphi 0, %s76
      %s78 = sphi 0, %s76
      %s79 = sphi 0, %s78
      %s93 = sphi 0, %s79
      %s97 = sphi 0, %s97
      %s99 = sphi 0, %s97
      %s100 = sphi 0, %s99
      %s114 = sphi 0, %s100
      %s120 = sphi 0, %s122
      %s123 = sphi 0, %s120
      %s124 = sphi 0, %s123
      %s140 = sphi 0, %s124
      %s146 = sphi 0, %s148
      %s149 = sphi 0, %s146
      %s150 = sphi 0, %s149
      %s166 = sphi 0, %s150
      %s172 = sphi 0, %s174
      %s175 = sphi 0, %s172
      %s176 = sphi 0, %s175
      %s192 = sphi 0, %s176
    $region4: #{tpu_custom_call.1} parent=1 // loop_header_branch
      %24 = sbr.rel (%p22) target = $region8
    $region5: #{tpu_custom_call.1} parent=1 // loop_body
      %s26 = ssub.s32 %s21, 1
      %s27 = ssub.s32 %s21, 2
      %s28 = sadd.s32 %s21, 1
      %s29 = ssub.s32 %s21, %s28
      %p30 = scmp.eq.s32.totalorder %s29, 0
      %s32 = sadd.s32 %s31, 1
      %s33 = scalar_select %p30, %s31, %s32
      %p36 = pneg %p30
      %p37 = scmp.eq.s32.totalorder %s21, 1
      %p38 = por %p36, %p37
      %p39 = scmp.ne.s32.totalorder %s31, %s34
      %p40 = scmp.eq.s32.totalorder %s21, 0
      %p41 = por %p39, %p40
      %p42 = scmp.ne.s32.totalorder %s31, %s34
      %p43 = scmp.eq.s32.totalorder %s26, 1
      %p44 = por %p42, %p43
      %p45 = scmp.ne.s32.totalorder %s34, %s35
      %p46 = scmp.eq.s32.totalorder %s26, 0
      %p47 = por %p45, %p46
      %p48 = scmp.ne.s32.totalorder %s34, %s35
      %p49 = scmp.eq.s32.totalorder %s27, 1
      %p50 = por %p48, %p49
      %p52 = scmp.ne.s32.totalorder %s35, %s51
      %p53 = scmp.eq.s32.totalorder %s27, 0
      %p54 = por %p52, %p53
      %s56 = sadd.s32 %s55, 1
      %p59 = scmp.eq.s32.totalorder %s21, 1
      %p60 = scmp.ne.s32.totalorder %s55, %s57
      %p61 = scmp.eq.s32.totalorder %s21, 0
      %p62 = por %p60, %p61
      %p63 = scmp.ne.s32.totalorder %s55, %s57
      %p64 = scmp.eq.s32.totalorder %s26, 1
      %p65 = por %p63, %p64
      %p66 = scmp.ne.s32.totalorder %s57, %s58
      %p67 = scmp.eq.s32.totalorder %s26, 0
      %p68 = por %p66, %p67
      %p69 = scmp.ne.s32.totalorder %s57, %s58
      %p70 = scmp.eq.s32.totalorder %s27, 1
      %p71 = por %p69, %p70
      %p73 = scmp.ne.s32.totalorder %s58, %s72
      %p74 = scmp.eq.s32.totalorder %s27, 0
      %p75 = por %p73, %p74
      %s77 = sadd.s32 %s76, 1
      %p80 = scmp.eq.s32.totalorder %s21, 1
      %p81 = scmp.ne.s32.totalorder %s76, %s78
      %p82 = scmp.eq.s32.totalorder %s21, 0
      %p83 = por %p81, %p82
      %p84 = scmp.ne.s32.totalorder %s76, %s78
      %p85 = scmp.eq.s32.totalorder %s26, 1
      %p86 = por %p84, %p85
      %p87 = scmp.ne.s32.totalorder %s78, %s79
      %p88 = scmp.eq.s32.totalorder %s26, 0
      %p89 = por %p87, %p88
      %p90 = scmp.ne.s32.totalorder %s78, %s79
      %p91 = scmp.eq.s32.totalorder %s27, 1
      %p92 = por %p90, %p91
      %p94 = scmp.ne.s32.totalorder %s79, %s93
      %p95 = scmp.eq.s32.totalorder %s27, 0
      %p96 = por %p94, %p95
      %s98 = sadd.s32 %s97, 1
      %p101 = scmp.eq.s32.totalorder %s21, 1
      %p102 = scmp.ne.s32.totalorder %s97, %s99
      %p103 = scmp.eq.s32.totalorder %s21, 0
      %p104 = por %p102, %p103
      %p105 = scmp.ne.s32.totalorder %s97, %s99
      %p106 = scmp.eq.s32.totalorder %s26, 1
      %p107 = por %p105, %p106
      %p108 = scmp.ne.s32.totalorder %s99, %s100
      %p109 = scmp.eq.s32.totalorder %s26, 0
      %p110 = por %p108, %p109
      %p111 = scmp.ne.s32.totalorder %s99, %s100
      %p112 = scmp.eq.s32.totalorder %s27, 1
      %p113 = por %p111, %p112
      %p115 = scmp.ne.s32.totalorder %s100, %s114
      %p116 = scmp.eq.s32.totalorder %s27, 0
      %p117 = por %p115, %p116
      %s118 = ssub.s32 %s21, %s28
      %p119 = scmp.eq.s32.totalorder %s118, 0
      %s121 = sadd.s32 %s120, 1
      %s122 = scalar_select %p119, %s120, %s121
      %p125 = pneg %p119
      %p126 = scmp.eq.s32.totalorder %s21, 1
      %p127 = por %p125, %p126
      %p128 = scmp.ne.s32.totalorder %s120, %s123
      %p129 = scmp.eq.s32.totalorder %s21, 0
      %p130 = por %p128, %p129
      %p131 = scmp.ne.s32.totalorder %s120, %s123
      %p132 = scmp.eq.s32.totalorder %s26, 1
      %p133 = por %p131, %p132
      %p134 = scmp.ne.s32.totalorder %s123, %s124
      %p135 = scmp.eq.s32.totalorder %s26, 0
      %p136 = por %p134, %p135
      %p137 = scmp.ne.s32.totalorder %s123, %s124
      %p138 = scmp.eq.s32.totalorder %s27, 1
      %p139 = por %p137, %p138
      %p141 = scmp.ne.s32.totalorder %s124, %s140
      %p142 = scmp.eq.s32.totalorder %s27, 0
      %p143 = por %p141, %p142
      %s144 = ssub.s32 %s21, %s28
      %p145 = scmp.eq.s32.totalorder %s144, 0
      %s147 = sadd.s32 %s146, 1
      %s148 = scalar_select %p145, %s146, %s147
      %p151 = pneg %p145
      %p152 = scmp.eq.s32.totalorder %s21, 1
      %p153 = por %p151, %p152
      %p154 = scmp.ne.s32.totalorder %s146, %s149
      %p155 = scmp.eq.s32.totalorder %s21, 0
      %p156 = por %p154, %p155
      %p157 = scmp.ne.s32.totalorder %s146, %s149
      %p158 = scmp.eq.s32.totalorder %s26, 1
      %p159 = por %p157, %p158
      %p160 = scmp.ne.s32.totalorder %s149, %s150
      %p161 = scmp.eq.s32.totalorder %s26, 0
      %p162 = por %p160, %p161
      %p163 = scmp.ne.s32.totalorder %s149, %s150
      %p164 = scmp.eq.s32.totalorder %s27, 1
      %p165 = por %p163, %p164
      %p167 = scmp.ne.s32.totalorder %s150, %s166
      %p168 = scmp.eq.s32.totalorder %s27, 0
      %p169 = por %p167, %p168
      %s170 = ssub.s32 %s21, %s28
      %p171 = scmp.eq.s32.totalorder %s170, 0
      %s173 = sadd.s32 %s172, 1
      %s174 = scalar_select %p171, %s172, %s173
      %p177 = pneg %p171
      %p178 = scmp.eq.s32.totalorder %s21, 1
      %p179 = por %p177, %p178
      %p180 = scmp.ne.s32.totalorder %s172, %s175
      %p181 = scmp.eq.s32.totalorder %s21, 0
      %p182 = por %p180, %p181
      %p183 = scmp.ne.s32.totalorder %s172, %s175
      %p184 = scmp.eq.s32.totalorder %s26, 1
      %p185 = por %p183, %p184
      %p186 = scmp.ne.s32.totalorder %s175, %s176
      %p187 = scmp.eq.s32.totalorder %s26, 0
      %p188 = por %p186, %p187
      %p189 = scmp.ne.s32.totalorder %s175, %s176
      %p190 = scmp.eq.s32.totalorder %s27, 1
      %p191 = por %p189, %p190
      %p193 = scmp.ne.s32.totalorder %s176, %s192
      %p194 = scmp.eq.s32.totalorder %s27, 0
      %p195 = por %p193, %p194
      %p196 = scmp.le.s32.totalorder 1, %s21
      %p197 = scmp.lt.s32.totalorder %s21, 3
      %p198 = pnand %p196, %p197
      %p199 = pneg %p198
      // Predicated region
      $region9: #{tpu_custom_call.1} parent=5 // pred_check
        _
      $region10: #{tpu_custom_call.1} parent=5 // pred_check_branch
        %201 = sbr.rel (%p198) target = $region12
      $region11: #{tpu_custom_call.1} parent=5 // pred_region
        %s202 = ssub.s32 %s21, 1
        // Predicated region
        $region13: #{tpu_custom_call.1} parent=11 // pred_check
          %p203 = pneg %p68
        $region14: #{tpu_custom_call.1} parent=11 // pred_check_branch
          %205 = sbr.rel (%p203) target = $region16
        $region15: #{tpu_custom_call.1} parent=11 // pred_region
          %207 = vsyncadd [#allocation8], 0
          %s209 = sshll.u32 %s1, 4
          %s210 = int_to_ptr.hbm [resolvable:$true] %s209
          %s211 = sshll.u32 [#allocation7], 4
          %s212 = int_to_ptr.vmem [resolvable:$true] %s211
          %214 = dma.hbm_to_vmem [thread:$0]  %s210, 128, %s212, [#allocation8]
        $region16: #{tpu_custom_call.1} parent=11 // pred_fallthru
          _
        // Predicated region
        $region17: #{tpu_custom_call.1} parent=11 // pred_check
          %p215 = pneg %p89
        $region18: #{tpu_custom_call.1} parent=11 // pred_check_branch
          %217 = sbr.rel (%p215) target = $region20
        $region19: #{tpu_custom_call.1} parent=11 // pred_region
          %219 = vsyncadd [#allocation8], 0
          %s221 = sshll.u32 %s2, 4
          %s222 = int_to_ptr.hbm [resolvable:$true] %s221
          %s223 = sshll.u32 [#allocation9], 4
          %s224 = int_to_ptr.vmem [resolvable:$true] %s223
          %226 = dma.hbm_to_vmem [thread:$0]  %s222, 256, %s224, [#allocation8]
        $region20: #{tpu_custom_call.1} parent=11 // pred_fallthru
          _
        // Predicated region
        $region21: #{tpu_custom_call.1} parent=11 // pred_check
          %p227 = pneg %p110
        $region22: #{tpu_custom_call.1} parent=11 // pred_check_branch
          %229 = sbr.rel (%p227) target = $region24
        $region23: #{tpu_custom_call.1} parent=11 // pred_region
          %231 = vsyncadd [#allocation11], 0
          %s233 = sshll.u32 %s3, 4
          %s234 = int_to_ptr.hbm [resolvable:$true] %s233
          %s235 = sshll.u32 [#allocation10], 4
          %s236 = int_to_ptr.vmem [resolvable:$true] %s235
          %238 = dma.hbm_to_vmem [thread:$0]  %s234, 64, %s236, [#allocation11]
        $region24: #{tpu_custom_call.1} parent=11 // pred_fallthru
          _
      $region12: #{tpu_custom_call.1} parent=5 // pred_fallthru
        _
      %p239 = scmp.lt.s32.totalorder %s21, 2
      // Predicated region
      $region25: #{tpu_custom_call.1} parent=5 // pred_check
        %p240 = pneg %p239
      $region26: #{tpu_custom_call.1} parent=5 // pred_check_branch
        %242 = sbr.rel (%p240) target = $region28
      $region27: #{tpu_custom_call.1} parent=5 // pred_region
        // Predicated region
        $region29: #{tpu_custom_call.1} parent=27 // pred_check
          %p243 = pneg %p41
        $region30: #{tpu_custom_call.1} parent=27 // pred_check_branch
          %245 = sbr.rel (%p243) target = $region32
        $region31: #{tpu_custom_call.1} parent=27 // pred_region
          %s246 = sand.u32 %s31, 1
          %s247 = scalar_lea.sflag [#allocation5], %s246
          %s248 = sand.u32 %s31, 1
          %s249 = smul.addr %s248, 8
          %s250 = scalar_lea.vmem [#allocation4], %s249
          %252 = vsyncadd %s247, 0
          %s253 = smul.addr %s21, 2
          %s254 = smul.addr %s253, 4
          %s255 = scalar_lea.hbm %s0, %s254
          %s257 = sshll.u32 %s255, 4
          %s258 = int_to_ptr.hbm [resolvable:$true] %s257
          %s259 = sshll.u32 %s250, 4
          %s260 = int_to_ptr.vmem [resolvable:$true] %s259
          %262 = dma.hbm_to_vmem [thread:$0]  %s258, 128, %s260, %s247
        $region32: #{tpu_custom_call.1} parent=27 // pred_fallthru
          _
      $region28: #{tpu_custom_call.1} parent=5 // pred_fallthru
        _
      %p263 = scmp.le.s32.totalorder 1, %s21
      %p264 = scmp.lt.s32.totalorder %s21, 3
      %p265 = pnand %p263, %p264
      %p266 = pneg %p265
      // Predicated region
      $region33: #{tpu_custom_call.1} parent=5 // pred_check
        _
      $region34: #{tpu_custom_call.1} parent=5 // pred_check_branch
        %268 = sbr.rel (%p265) target = $region36
      $region35: #{tpu_custom_call.1} parent=5 // pred_region
        %s269 = ssub.s32 %s21, 1
        %s270 = sand.u32 %s34, 1
        %s271 = scalar_lea.sflag [#allocation5], %s270
        %s272 = sand.u32 %s34, 1
        %s273 = smul.addr %s272, 8
        %s274 = scalar_lea.vmem [#allocation4], %s273
        // Predicated region
        $region37: #{tpu_custom_call.1} parent=35 // pred_check
          %p275 = pneg %p47
        $region38: #{tpu_custom_call.1} parent=35 // pred_check_branch
          %277 = sbr.rel (%p275) target = $region40
        $region39: #{tpu_custom_call.1} parent=35 // pred_region
          %279 = dma.done %s271, 128
        $region40: #{tpu_custom_call.1} parent=35 // pred_fallthru
          _
        // Predicated region
        $region41: #{tpu_custom_call.1} parent=35 // pred_check
          %p280 = pneg %p68
        $region42: #{tpu_custom_call.1} parent=35 // pred_check_branch
          %282 = sbr.rel (%p280) target = $region44
        $region43: #{tpu_custom_call.1} parent=35 // pred_region
          %284 = dma.done [#allocation8], 128
        $region44: #{tpu_custom_call.1} parent=35 // pred_fallthru
          _
        // Predicated region
        $region45: #{tpu_custom_call.1} parent=35 // pred_check
          %p285 = pneg %p89
        $region46: #{tpu_custom_call.1} parent=35 // pred_check_branch
          %287 = sbr.rel (%p285) target = $region48
        $region47: #{tpu_custom_call.1} parent=35 // pred_region
          %289 = dma.done [#allocation8], 256
        $region48: #{tpu_custom_call.1} parent=35 // pred_fallthru
          _
        // Predicated region
        $region49: #{tpu_custom_call.1} parent=35 // pred_check
          %p290 = pneg %p110
        $region50: #{tpu_custom_call.1} parent=35 // pred_check_branch
          %292 = sbr.rel (%p290) target = $region52
        $region51: #{tpu_custom_call.1} parent=35 // pred_region
          %294 = dma.done [#allocation11], 64
        $region52: #{tpu_custom_call.1} parent=35 // pred_fallthru
          _
        %s295 = sand.u32 %s34, 1
        %s296 = scalar_lea.sflag [#allocation5], %s295
        %s297 = sand.u32 %s34, 1
        %s298 = smul.addr %s297, 8
        %s299 = scalar_lea.vmem [#allocation4], %s298
        %p300 = pneg %p47
        %p301 = pneg %p44
        %p302 = pneg %p68
        %p303 = pneg %p65
        %p304 = pneg %p89
        %p305 = pneg %p86
        %p306 = pneg %p110
        %p307 = pneg %p107
        %p308 = pneg %p136
        %p309 = pneg %p133
        %s310 = sand.u32 %s123, 1
        %s311 = scalar_lea.sflag [#allocation6], %s310
        %s312 = sand.u32 %s123, 1
        %s313 = smul.addr %s312, 16
        %s314 = scalar_lea.vmem [#allocation12], %s313
        %p315 = pneg %p162
        %p316 = pneg %p159
        %p317 = scmp.lt.s32.totalorder %s26, 1
        %s318 = scalar_select %p317, %s26, 1
        %s319 = smul.addr %s318, 8
        %s320 = scalar_lea.vmem %s5, %s319
        %p321 = pneg %p188
        %p322 = pneg %p185
        %p323 = scmp.lt.s32.totalorder %s26, 1
        %s324 = scalar_select %p323, %s26, 1
        %s325 = smul.addr %s324, 8
        %s326 = scalar_lea.vmem %s6, %s325
        %p327 = scmp.lt.s32.totalorder %s26, 1
        %s328 = scalar_select %p327, %s26, 1
        %s329 = smul.addr %s328, 8
        %s330 = scalar_lea.vmem %s5, %s329
        %p331 = scmp.lt.s32.totalorder %s26, 1
        %s332 = scalar_select %p331, %s26, 1
        %s333 = smul.addr %s332, 8
        %s334 = scalar_lea.vmem %s6, %s333
        %v335 = vld [vmem:[%s274] sm:$0xff]
        %336 = vst [vmem:[#allocation2] sm:$0xff] %v335
        %337 = vst [vmem:[#allocation2 + $0x8] sm:$0xff] %v335
        %v338 = vld [vmem:[#allocation10] ss:$2 sm:$0x3]
        %s339 = scalar_lea.vmem [#allocation10], 1
        %v340 = vld [vmem:[%s339] ss:$2 sm:$0x3]
        %v341 = vld [vmem:[#allocation2 + $0x4] sm:$0xff]
        %v342 = vld [vmem:[#allocation2 + $0xc] sm:$0xf]
        %vm343 = vcmp.ge.s32.totalorder %v338, 1
        %vm344 = vcmp.ge.s32.totalorder %v340, 1
        %vm345 = vmand %vm343, %vm344
        %v346 = vsel %vm345, 1, 0
        %v347 = vperm.slane %v346, 0
        %v348 = vperm.slane %v346, 1
        %vm349 = vcmp.eq.s32.totalorder %v347, 1
        %vm350 = vcmp.eq.s32.totalorder %v348, 1
        %353 = vst [vmem:[#allocation1] ss:$2 sm:$0xff] %v341
        %s354 = scalar_lea.vmem [#allocation1], 16
        %355 = vst [vmem:[%s354] ss:$2 sm:$0xff] %v342
        %v356 = vld.sshfl [vmem:[#allocation1] sm:$0xff pattern:$0x75316420]
        %v357 = vld.sshfl [vmem:[#allocation1 + $0x8] sm:$0xff pattern:$0x75316420]
        %v358 = vld.sshfl [vmem:[#allocation1 + $0x10] sm:$0xff pattern:$0x75316420]
        %359 = vrot.lane.b32.xlu0 %v356, 17
        %v360 = vpop.permute.xlu0 %359
        %361 = vrot.lane.b32.xlu0 %v357, 17
        %v362 = vpop.permute.xlu0 %361
        %363 = vrot.lane.b32.xlu0 %v358, 17
        %v364 = vpop.permute.xlu0 %363
        %vm365 = vcmask 138240
        %v366 = vsel %vm365, %v360, %v362
        %v367 = vsel %vm365, %v362, %v364
        %v370 = vsel %vm349, %v366, 0.0
        %v371 = vsel %vm350, %v367, 0.0
        %372 = vst [vmem:[#allocation3] sm:$0xf] %v370
        %373 = vst [vmem:[#allocation3 + $0x8] sm:$0xf] %v371
        %v374 = vld [vmem:[#allocation2 + $0x4] sm:$0xff]
        %v375 = vld [vmem:[#allocation2 + $0xc] sm:$0xf]
        %v376 = vsel %vm343, 1, 0
        %v377 = vperm.slane %v376, 0
        %v378 = vperm.slane %v376, 1
        %vm379 = vcmp.eq.s32.totalorder %v377, 1
        %vm380 = vcmp.eq.s32.totalorder %v378, 1
        %383 = vst [vmem:[#allocation1] ss:$2 sm:$0xff] %v374
        %s384 = scalar_lea.vmem [#allocation1], 16
        %385 = vst [vmem:[%s384] ss:$2 sm:$0xff] %v375
        %v386 = vld.sshfl [vmem:[#allocation1] sm:$0xff pattern:$0x75316420]
        %v387 = vld.sshfl [vmem:[#allocation1 + $0x8] sm:$0xff pattern:$0x75316420]
        %v388 = vld.sshfl [vmem:[#allocation1 + $0x10] sm:$0xff pattern:$0x75316420]
        %389 = vrot.lane.b32.xlu0 %v386, 16
        %v390 = vpop.permute.xlu0 %389
        %391 = vrot.lane.b32.xlu0 %v387, 16
        %v392 = vpop.permute.xlu0 %391
        %393 = vrot.lane.b32.xlu0 %v388, 16
        %v394 = vpop.permute.xlu0 %393
        %vm395 = vcmask 130048
        %v396 = vsel %vm395, %v390, %v392
        %v397 = vsel %vm395, %v392, %v394
        %v400 = vsel %vm379, %v396, 0.0
        %v401 = vsel %vm380, %v397, 0.0
        %v404 = vrot.slane %v400, 4
        %v405 = vrot.slane %v401, 4
        %408 = vst [vmem:[#allocation3] sm:$0xf0] %v404
        %409 = vst [vmem:[#allocation3 + $0x8] sm:$0xf0] %v405
        %v410 = vld [vmem:[#allocation2 + $0x4] sm:$0xff]
        %v411 = vld [vmem:[#allocation2 + $0xc] sm:$0xf]
        %vm412 = vcmp.lt.s32.totalorder %v340, 15
        %vm413 = vmand %vm343, %vm412
        %v414 = vsel %vm413, 1, 0
        %v415 = vperm.slane %v414, 0
        %v416 = vperm.slane %v414, 1
        %vm417 = vcmp.eq.s32.totalorder %v415, 1
        %vm418 = vcmp.eq.s32.totalorder %v416, 1
        %421 = vst [vmem:[#allocation1] ss:$2 sm:$0xff] %v410
        %s422 = scalar_lea.vmem [#allocation1], 16
        %423 = vst [vmem:[%s422] ss:$2 sm:$0xff] %v411
        %v424 = vld.sshfl [vmem:[#allocation1] sm:$0xff pattern:$0x75316420]
        %v425 = vld.sshfl [vmem:[#allocation1 + $0x8] sm:$0xff pattern:$0x75316420]
        %v426 = vld.sshfl [vmem:[#allocation1 + $0x10] sm:$0xff pattern:$0x75316420]
        %427 = vrot.lane.b32.xlu0 %v424, 15
        %v428 = vpop.permute.xlu0 %427
        %429 = vrot.lane.b32.xlu0 %v425, 15
        %v430 = vpop.permute.xlu0 %429
        %431 = vrot.lane.b32.xlu0 %v426, 15
        %v432 = vpop.permute.xlu0 %431
        %vm433 = vcmask 121856
        %v434 = vsel %vm433, %v428, %v430
        %v435 = vsel %vm433, %v430, %v432
        %v438 = vsel %vm417, %v434, 0.0
        %v439 = vsel %vm418, %v435, 0.0
        %440 = vst [vmem:[#allocation3 + $0x10] sm:$0xf] %v438
        %441 = vst [vmem:[#allocation3 + $0x18] sm:$0xf] %v439
        %v442 = vld [vmem:[#allocation2 + $0x4] sm:$0xff]
        %v443 = vld [vmem:[#allocation2 + $0xc] sm:$0xf]
        %v444 = vsel %vm344, 1, 0
        %v445 = vperm.slane %v444, 0
        %v446 = vperm.slane %v444, 1
        %vm447 = vcmp.eq.s32.totalorder %v445, 1
        %vm448 = vcmp.eq.s32.totalorder %v446, 1
        %451 = vst [vmem:[#allocation1] ss:$2 sm:$0xff] %v442
        %s452 = scalar_lea.vmem [#allocation1], 16
        %453 = vst [vmem:[%s452] ss:$2 sm:$0xff] %v443
        %v454 = vld.sshfl [vmem:[#allocation1] sm:$0xff pattern:$0x75316420]
        %v455 = vld.sshfl [vmem:[#allocation1 + $0x8] sm:$0xff pattern:$0x75316420]
        %v456 = vld.sshfl [vmem:[#allocation1 + $0x10] sm:$0xff pattern:$0x75316420]
        %457 = vrot.lane.b32.xlu0 %v454, 1
        %v458 = vpop.permute.xlu0 %457
        %459 = vrot.lane.b32.xlu0 %v455, 1
        %v460 = vpop.permute.xlu0 %459
        %461 = vrot.lane.b32.xlu0 %v456, 1
        %v462 = vpop.permute.xlu0 %461
        %vm463 = vcmask 7168
        %v464 = vsel %vm463, %v458, %v460
        %v465 = vsel %vm463, %v460, %v462
        %v468 = vsel %vm447, %v464, 0.0
        %v469 = vsel %vm448, %v465, 0.0
        %v472 = vrot.slane %v468, 4
        %v473 = vrot.slane %v469, 4
        %476 = vst [vmem:[#allocation3 + $0x10] sm:$0xf0] %v472
        %477 = vst [vmem:[#allocation3 + $0x18] sm:$0xf0] %v473
        %479 = vst [vmem:[#allocation1] ss:$2 sm:$0xff] %v335
        %v480 = vld.sshfl [vmem:[#allocation1] sm:$0xff pattern:$0x75316420]
        %v481 = vld.sshfl [vmem:[#allocation1 + $0x8] sm:$0xff pattern:$0x75316420]
        %484 = vst [vmem:[#allocation3 + $0x20] sm:$0xf] %v480
        %485 = vst [vmem:[#allocation3 + $0x28] sm:$0xf] %v481
        %v486 = vld [vmem:[#allocation2] sm:$0xff]
        %v487 = vld [vmem:[#allocation2 + $0x8] sm:$0xf]
        %v488 = vsel %vm412, 1, 0
        %v489 = vperm.slane %v488, 0
        %v490 = vperm.slane %v488, 1
        %vm491 = vcmp.eq.s32.totalorder %v489, 1
        %vm492 = vcmp.eq.s32.totalorder %v490, 1
        %495 = vst [vmem:[#allocation1] ss:$2 sm:$0xff] %v486
        %s496 = scalar_lea.vmem [#allocation1], 16
        %497 = vst [vmem:[%s496] ss:$2 sm:$0xff] %v487
        %v498 = vld.sshfl [vmem:[#allocation1] sm:$0xff pattern:$0x75316420]
        %v499 = vld.sshfl [vmem:[#allocation1 + $0x8] sm:$0xff pattern:$0x75316420]
        %v500 = vld.sshfl [vmem:[#allocation1 + $0x10] sm:$0xff pattern:$0x75316420]
        %501 = vrot.lane.b32.xlu0 %v498, 127
        %v502 = vpop.permute.xlu0 %501
        %503 = vrot.lane.b32.xlu0 %v499, 127
        %v504 = vpop.permute.xlu0 %503
        %505 = vrot.lane.b32.xlu0 %v500, 127
        %v506 = vpop.permute.xlu0 %505
        %vm507 = vcmask 1039360
        %v508 = vsel %vm507, %v502, %v504
        %v509 = vsel %vm507, %v504, %v506
        %v512 = vsel %vm491, %v508, 0.0
        %v513 = vsel %vm492, %v509, 0.0
        %v516 = vrot.slane %v512, 4
        %v517 = vrot.slane %v513, 4
        %520 = vst [vmem:[#allocation3 + $0x20] sm:$0xf0] %v516
        %521 = vst [vmem:[#allocation3 + $0x28] sm:$0xf0] %v517
        %v522 = vld [vmem:[#allocation2] sm:$0xff]
        %v523 = vld [vmem:[#allocation2 + $0x8] sm:$0xf]
        %vm524 = vcmp.lt.s32.totalorder %v338, 15
        %vm525 = vmand %vm524, %vm344
        %v526 = vsel %vm525, 1, 0
        %v527 = vperm.slane %v526, 0
        %v528 = vperm.slane %v526, 1
        %vm529 = vcmp.eq.s32.totalorder %v527, 1
        %vm530 = vcmp.eq.s32.totalorder %v528, 1
        %533 = vst [vmem:[#allocation1] ss:$2 sm:$0xff] %v522
        %s534 = scalar_lea.vmem [#allocation1], 16
        %535 = vst [vmem:[%s534] ss:$2 sm:$0xff] %v523
        %v536 = vld.sshfl [vmem:[#allocation1] sm:$0xff pattern:$0x75316420]
        %v537 = vld.sshfl [vmem:[#allocation1 + $0x8] sm:$0xff pattern:$0x75316420]
        %v538 = vld.sshfl [vmem:[#allocation1 + $0x10] sm:$0xff pattern:$0x75316420]
        %539 = vrot.lane.b32.xlu0 %v536, 113
        %v540 = vpop.permute.xlu0 %539
        %541 = vrot.lane.b32.xlu0 %v537, 113
        %v542 = vpop.permute.xlu0 %541
        %543 = vrot.lane.b32.xlu0 %v538, 113
        %v544 = vpop.permute.xlu0 %543
        %vm545 = vcmask 924672
        %v546 = vsel %vm545, %v540, %v542
        %v547 = vsel %vm545, %v542, %v544
        %v550 = vsel %vm529, %v546, 0.0
        %v551 = vsel %vm530, %v547, 0.0
        %552 = vst [vmem:[#allocation3 + $0x30] sm:$0xf] %v550
        %553 = vst [vmem:[#allocation3 + $0x38] sm:$0xf] %v551
        %v554 = vld [vmem:[#allocation2] sm:$0xff]
        %v555 = vld [vmem:[#allocation2 + $0x8] sm:$0xf]
        %v556 = vsel %vm524, 1, 0
        %v557 = vperm.slane %v556, 0
        %v558 = vperm.slane %v556, 1
        %vm559 = vcmp.eq.s32.totalorder %v557, 1
        %vm560 = vcmp.eq.s32.totalorder %v558, 1
        %563 = vst [vmem:[#allocation1] ss:$2 sm:$0xff] %v554
        %s564 = scalar_lea.vmem [#allocation1], 16
        %565 = vst [vmem:[%s564] ss:$2 sm:$0xff] %v555
        %v566 = vld.sshfl [vmem:[#allocation1] sm:$0xff pattern:$0x75316420]
        %v567 = vld.sshfl [vmem:[#allocation1 + $0x8] sm:$0xff pattern:$0x75316420]
        %v568 = vld.sshfl [vmem:[#allocation1 + $0x10] sm:$0xff pattern:$0x75316420]
        %569 = vrot.lane.b32.xlu0 %v566, 112
        %v570 = vpop.permute.xlu0 %569
        %571 = vrot.lane.b32.xlu0 %v567, 112
        %v572 = vpop.permute.xlu0 %571
        %573 = vrot.lane.b32.xlu0 %v568, 112
        %v574 = vpop.permute.xlu0 %573
        %vm575 = vcmask 916480
        %v576 = vsel %vm575, %v570, %v572
        %v577 = vsel %vm575, %v572, %v574
        %v580 = vsel %vm559, %v576, 0.0
        %v581 = vsel %vm560, %v577, 0.0
        %v584 = vrot.slane %v580, 4
        %v585 = vrot.slane %v581, 4
        %588 = vst [vmem:[#allocation3 + $0x30] sm:$0xf0] %v584
        %589 = vst [vmem:[#allocation3 + $0x38] sm:$0xf0] %v585
        %v590 = vld [vmem:[#allocation2] sm:$0xff]
        %v591 = vld [vmem:[#allocation2 + $0x8] sm:$0xf]
        %vm592 = vmand %vm524, %vm412
        %v593 = vsel %vm592, 1, 0
        %v594 = vperm.slane %v593, 0
        %v595 = vperm.slane %v593, 1
        %vm596 = vcmp.eq.s32.totalorder %v594, 1
        %vm597 = vcmp.eq.s32.totalorder %v595, 1
        %600 = vst [vmem:[#allocation1] ss:$2 sm:$0xff] %v590
        %s601 = scalar_lea.vmem [#allocation1], 16
        %602 = vst [vmem:[%s601] ss:$2 sm:$0xff] %v591
        %v603 = vld.sshfl [vmem:[#allocation1] sm:$0xff pattern:$0x75316420]
        %v604 = vld.sshfl [vmem:[#allocation1 + $0x8] sm:$0xff pattern:$0x75316420]
        %v605 = vld.sshfl [vmem:[#allocation1 + $0x10] sm:$0xff pattern:$0x75316420]
        %606 = vrot.lane.b32.xlu0 %v603, 111
        %v607 = vpop.permute.xlu0 %606
        %608 = vrot.lane.b32.xlu0 %v604, 111
        %v609 = vpop.permute.xlu0 %608
        %610 = vrot.lane.b32.xlu0 %v605, 111
        %v611 = vpop.permute.xlu0 %610
        %vm612 = vcmask 908288
        %v613 = vsel %vm612, %v607, %v609
        %v614 = vsel %vm612, %v609, %v611
        %v617 = vsel %vm596, %v613, 0.0
        %v618 = vsel %vm597, %v614, 0.0
        %619 = vst [vmem:[#allocation3 + $0x40] sm:$0xf] %v617
        %620 = vst [vmem:[#allocation3 + $0x48] sm:$0xf] %v618
        %v621 = vld [vmem:[#allocation7] sm:$0xff]
        %v622 = vld [vmem:[#allocation3] sm:$0xff]
        %v623 = vld [vmem:[#allocation3 + $0x8] sm:$0xff]
        %v624 = vld [vmem:[#allocation3 + $0x10] sm:$0xff]
        %v625 = vld [vmem:[#allocation3 + $0x18] sm:$0xff]
        %v626 = vld [vmem:[#allocation3 + $0x20] sm:$0xff]
        %v627 = vld [vmem:[#allocation3 + $0x28] sm:$0xff]
        %v628 = vld [vmem:[#allocation3 + $0x30] sm:$0xff]
        %v629 = vld [vmem:[#allocation3 + $0x38] sm:$0xff]
        %v630 = vld [vmem:[#allocation3 + $0x40] sm:$0xf]
        %v631 = vld [vmem:[#allocation3 + $0x48] sm:$0xf]
        %v632 = vld [vmem:[#allocation9] sm:$0xff]
        %v633 = vld [vmem:[#allocation9 + $0x8] sm:$0xff]
        %vm634 = vcmask 293888
        %v636 = vsel %vm634, %v621, 0
        %vm638 = vcmask 1043456
        %v640 = vsel %vm638, %v630, 0
        %v643 = vsel %vm638, %v631, 0
        %645 = vmatpush.msra.mxu0 0.0
        %646 = vmatpush.msra.mxu0 0.0
        %647 = vmatpush.msra.mxu0 0.0
        %648 = vmatpush.msra.mxu0 0.0
        %649 = vmatpush.msra.mxu0 0.0
        %650 = vmatpush.msra.mxu0 0.0
        %651 = vmatpush.msra.mxu0 0.0
        %652 = vmatpush.msra.mxu0 0.0
        %653 = vmatpush.msra.mxu0 0.0
        %654 = vmatpush.msra.mxu0 0.0
        %655 = vmatpush.msra.mxu0 0.0
        %656 = vmatpush.msra.mxu0 %v640
        %657 = vmatpush.msra.mxu0 %v628
        %658 = vmatpush.msra.mxu0 %v626
        %659 = vmatpush.msra.mxu0 %v624
        %660 = vmatpush.msra.mxu0 %v622
        %661 = vmatmul.f32.gmra.mxu0 %v636
        %v662 = vpop.f32.mrf.mxu0
        %v663 = vadd.f32 %v632, %v662
        %664 = vdwg.mxu0
        %665 = vmatpush.msra.mxu0 0.0
        %666 = vmatpush.msra.mxu0 0.0
        %667 = vmatpush.msra.mxu0 0.0
        %668 = vmatpush.msra.mxu0 0.0
        %669 = vmatpush.msra.mxu0 0.0
        %670 = vmatpush.msra.mxu0 0.0
        %671 = vmatpush.msra.mxu0 0.0
        %672 = vmatpush.msra.mxu0 0.0
        %673 = vmatpush.msra.mxu0 0.0
        %674 = vmatpush.msra.mxu0 0.0
        %675 = vmatpush.msra.mxu0 0.0
        %676 = vmatpush.msra.mxu0 %v643
        %677 = vmatpush.msra.mxu0 %v629
        %678 = vmatpush.msra.mxu0 %v627
        %679 = vmatpush.msra.mxu0 %v625
        %680 = vmatpush.msra.mxu0 %v623
        %681 = vmatmul.f32.gmra.mxu0 %v636
        %v682 = vpop.f32.mrf.mxu0
        %v683 = vadd.f32 %v633, %v682
        %684 = vdwg.mxu0
        %685 = vst [vmem:[%s314] sm:$0xff] %v663
        %686 = vst [vmem:[%s314 + $0x8] sm:$0xff] %v683
        %v687 = vadd.f32 %v663, %v683
        %688 = vadd.xlane.f32.xlu0 %v687
        %v689 = vpop.xlane.xlu0 %688
        %v690 = vmul.f32 %v689, 0.00390625
        %v691 = vsub.f32 %v663, %v690
        %v692 = vsub.f32 %v683, %v690
        %693 = vst.msk [vmem:[%s330] sm:$0xff] %vm463, %v689
        %v694 = vmul.f32 %v691, %v691
        %v695 = vmul.f32 %v692, %v692
        %v696 = vadd.f32 %v694, %v695
        %697 = vadd.xlane.f32.xlu0 %v696
        %v698 = vpop.xlane.xlu0 %697
        %699 = vst.msk [vmem:[%s334] sm:$0xff] %vm463, %v698
        %s700 = sand.u32 %s123, 1
        %s701 = scalar_lea.sflag [#allocation6], %s700
        %s702 = sand.u32 %s123, 1
        %s703 = smul.addr %s702, 16
        %s704 = scalar_lea.vmem [#allocation12], %s703
        %p705 = scmp.lt.s32.totalorder %s26, 1
        %s706 = scalar_select %p705, %s26, 1
        %s707 = smul.addr %s706, 8
        %s708 = scalar_lea.vmem %s5, %s707
        %p709 = scmp.lt.s32.totalorder %s26, 1
        %s710 = scalar_select %p709, %s26, 1
        %s711 = smul.addr %s710, 8
        %s712 = scalar_lea.vmem %s6, %s711
        // Predicated region
        $region53: #{tpu_custom_call.1} parent=35 // pred_check
          %p713 = pneg %p133
        $region54: #{tpu_custom_call.1} parent=35 // pred_check_branch
          %715 = sbr.rel (%p713) target = $region56
        $region55: #{tpu_custom_call.1} parent=35 // pred_region
          %717 = vsyncadd %s701, 0
          %s718 = smul.addr %s26, 2
          %s719 = smul.addr %s718, 8
          %s720 = scalar_lea.hbm %s4, %s719
          %s722 = sshll.u32 %s704, 4
          %s723 = int_to_ptr.vmem [resolvable:$true] %s722
          %s724 = sshll.u32 %s720, 4
          %s725 = int_to_ptr.hbm [resolvable:$true] %s724
          %727 = dma.vmem_to_hbm [thread:$0]  %s723, 256, %s725, %s701
        $region56: #{tpu_custom_call.1} parent=35 // pred_fallthru
          _
        // Predicated region
        $region57: #{tpu_custom_call.1} parent=35 // pred_check
          %p728 = pneg %p159
        $region58: #{tpu_custom_call.1} parent=35 // pred_check_branch
          %730 = sbr.rel (%p728) target = $region60
        $region59: #{tpu_custom_call.1} parent=35 // pred_region
          _
        $region60: #{tpu_custom_call.1} parent=35 // pred_fallthru
          _
        // Predicated region
        $region61: #{tpu_custom_call.1} parent=35 // pred_check
          %p731 = pneg %p185
        $region62: #{tpu_custom_call.1} parent=35 // pred_check_branch
          %733 = sbr.rel (%p731) target = $region64
        $region63: #{tpu_custom_call.1} parent=35 // pred_region
          _
        $region64: #{tpu_custom_call.1} parent=35 // pred_fallthru
          _
      $region36: #{tpu_custom_call.1} parent=5 // pred_fallthru
        _
      %p734 = scmp.le.s32.totalorder 2, %s21
      // Predicated region
      $region65: #{tpu_custom_call.1} parent=5 // pred_check
        %p735 = pneg %p734
      $region66: #{tpu_custom_call.1} parent=5 // pred_check_branch
        %737 = sbr.rel (%p735) target = $region68
      $region67: #{tpu_custom_call.1} parent=5 // pred_region
        %s738 = ssub.s32 %s21, 2
        // Predicated region
        $region69: #{tpu_custom_call.1} parent=67 // pred_check
          %p739 = pneg %p139
        $region70: #{tpu_custom_call.1} parent=67 // pred_check_branch
          %741 = sbr.rel (%p739) target = $region72
        $region71: #{tpu_custom_call.1} parent=67 // pred_region
          %s742 = sand.u32 %s124, 1
          %s743 = scalar_lea.sflag [#allocation6], %s742
          %s744 = sand.u32 %s124, 1
          %s745 = smul.addr %s744, 16
          %s746 = scalar_lea.vmem [#allocation12], %s745
          %748 = dma.done %s743, 256
        $region72: #{tpu_custom_call.1} parent=67 // pred_fallthru
          _
        // Predicated region
        $region73: #{tpu_custom_call.1} parent=67 // pred_check
          %p749 = pneg %p165
        $region74: #{tpu_custom_call.1} parent=67 // pred_check_branch
          %751 = sbr.rel (%p749) target = $region76
        $region75: #{tpu_custom_call.1} parent=67 // pred_region
          %p752 = scmp.lt.s32.totalorder %s27, 1
          %s753 = scalar_select %p752, %s27, 1
          %s754 = smul.addr %s753, 8
          %s755 = scalar_lea.vmem %s5, %s754
        $region76: #{tpu_custom_call.1} parent=67 // pred_fallthru
          _
        // Predicated region
        $region77: #{tpu_custom_call.1} parent=67 // pred_check
          %p756 = pneg %p191
        $region78: #{tpu_custom_call.1} parent=67 // pred_check_branch
          %758 = sbr.rel (%p756) target = $region80
        $region79: #{tpu_custom_call.1} parent=67 // pred_region
          %p759 = scmp.lt.s32.totalorder %s27, 1
          %s760 = scalar_select %p759, %s27, 1
          %s761 = smul.addr %s760, 8
          %s762 = scalar_lea.vmem %s6, %s761
        $region80: #{tpu_custom_call.1} parent=67 // pred_fallthru
          _
      $region68: #{tpu_custom_call.1} parent=5 // pred_fallthru
        _
    $region6: #{tpu_custom_call.1} parent=1 // loop_footer
      %s25 = sadd.s32 1, %s21
    $region7: #{tpu_custom_call.1} parent=1 // loop_footer_branch
      %20 = sbr.rel target = $region3
    $region8: #{tpu_custom_call.1} parent=1 // loop_exit
      _
    %763 = vsyncpa [#allocation5], 1
    %s764 = scalar_lea.sflag [#allocation5], 1
    %765 = vsyncpa %s764, 1
    %766 = vsyncpa [#allocation8], 1
    %767 = vsyncpa [#allocation11], 1
    %768 = vsyncpa [#allocation6], 1
    %s769 = scalar_lea.sflag [#allocation6], 1
    %770 = vsyncpa %s769, 1

</llo_original>
